<compile_context>
chip_gen: v7x
topology: tpu7x:2x2x1
jax: 0.10.0
libtpu: 0.0.40
codegen_flags: <defaults>
</compile_context>

<pallas_src>
import functools

import jax
import jax.numpy as jnp
import numpy as np
from jax import lax
from jax.experimental import pallas as pl
from jax.experimental.pallas import tpu as pltpu

LANE = 128


def _round_up(x, m):
    return (x + m - 1) // m * m


# -----------------------------------------------------------------------------
# Pallas kernel: fused im2col (3 tap-row matmuls against a width-lowered banded
# weight) -> exact bf16 integer matmul on MXU -> folded dequant/bias/fake-quant
# epilogue -> lane-dense store.
# -----------------------------------------------------------------------------
def fused_conv_kernel(qv_ref, x_ref, w_ref, b_ref, out_ref):
    # qv (SMEM, f32[4]): [a = in_s*w_s/out_s, lo = -out_zp, hi = 255-out_zp, out_s]
    a = qv_ref[0]
    lo = qv_ref[1]
    hi = qv_ref[2]
    out_s = qv_ref[3]

    th = out_ref.shape[0]          # output rows per grid step
    kh_taps = w_ref.shape[0]       # 3

    acc = jnp.zeros(out_ref.shape, jnp.float32)
    # Fused im2col: for each vertical tap, take the (static, halo'd) row slice
    # of the padded activation block and multiply by the banded weight.  The
    # activation values are small integers => exact on the bf16 MXU path with
    # f32 accumulation (|sum| < 2^24).
    for kh in range(kh_taps):
        xk = x_ref[kh:kh + th, :].astype(jnp.bfloat16)
        acc += jnp.dot(xk, w_ref[kh], preferred_element_type=jnp.float32)

    # Folded epilogue:
    #   y/out_s = acc * (in_s*w_s/out_s) + bias/out_s
    #   q - out_zp = clip(round(y/out_s), -out_zp, 255-out_zp)
    #   out = (q - out_zp) * out_s
    r = jnp.clip(jnp.round(acc * a + b_ref[...]), lo, hi)
    out_ref[...] = r * out_s


def sim_wrapper_forward(x_nchw, weight, bias, encodings, *, rows_per_step=8):
    """Fake-quantized conv forward (the quant-sim model's forward pass)."""
    N, C, H, W = x_nchw.shape
    Cout, Cin, KH, KW = weight.shape
    assert Cin == C and KH == 3 and KW == 3
    in_s, in_zp, w_s, out_s, out_zp = encodings

    th = rows_per_step if H % rows_per_step == 0 else H   # output rows / step
    nh = H // th
    W2C = (W + 2) * C            # flattened padded-row width (K of each matmul)
    MC = W * Cout                # real output columns per row
    C_lanes = _round_up(MC, LANE)

    # --- input fake-quant, once, on the raw input (O(input), not O(patches)) ---
    inv_in_s = 1.0 / in_s
    q = jnp.clip(jnp.round(x_nchw * inv_in_s) + in_zp, 0.0, 255.0)
    pz = q - in_zp                                # integer-valued, in [-255, 255]
    x_nhwc = jnp.transpose(pz, (0, 2, 3, 1))      # (N, H, W, C)
    # Spatial zero padding == exact dequantized zero (pz = 0) by construction.
    x_pad = jnp.pad(x_nhwc, ((0, 0), (1, 1), (1, 1), (0, 0)))
    rows = x_pad.reshape(N, H + 2, W2C).astype(jnp.float32)
    # Overlapping (halo'd) row groups: th+2 padded rows per th output rows.
    groups = jnp.stack([rows[:, g * th:g * th + th + 2, :] for g in range(nh)],
                       axis=1)                    # (N, nh, th+2, W2C)

    # --- weight fake-quant + width-lowered banded weight, built once ---------
    q_w = jnp.clip(jnp.round(weight / w_s), -128.0, 127.0)   # (Cout, C, 3, 3)
    qw_t = jnp.transpose(q_w, (2, 1, 3, 0))                  # (kh, c, kw, co)
    jw = jnp.arange(W + 2)[:, None]
    wo = jnp.arange(W)[None, :]
    kw_rel = jw - wo                                          # (W+2, W)
    valid = (kw_rel >= 0) & (kw_rel <= KW - 1)
    kw_c = jnp.clip(kw_rel, 0, KW - 1)
    band = qw_t[:, :, kw_c, :]                                # (kh, c, W+2, W, co)
    band = jnp.where(valid[None, None, :, :, None], band, 0.0)
    # W_band[kh, jw*C + c, w*Cout + co] = q_w[co, c, kh, jw - w]
    w_band = jnp.transpose(band, (0, 2, 1, 3, 4)).reshape(KH, W2C, MC)
    w_band = jnp.pad(w_band, ((0, 0), (0, 0), (0, C_lanes - MC)))
    w_band = w_band.astype(jnp.bfloat16)          # small integers: exact in bf16

    inv_out_s = 1.0 / out_s
    a = (in_s * w_s) * inv_out_s
    b_vec = jnp.tile(bias * inv_out_s, W)                     # column w*Cout+co
    b_vec = jnp.pad(b_vec, (0, C_lanes - MC)).reshape(1, C_lanes)
    b_vec = b_vec.astype(jnp.float32)

    qv = jnp.stack([a, -out_zp, 255.0 - out_zp, out_s]).astype(jnp.float32)

    out = pl.pallas_call(
        fused_conv_kernel,
        out_shape=jax.ShapeDtypeStruct((N, H, C_lanes), jnp.float32),
        grid_spec=pltpu.PrefetchScalarGridSpec(
            num_scalar_prefetch=0,
            grid=(N, nh),
            in_specs=[
                pl.BlockSpec(memory_space=pltpu.MemorySpace.SMEM),    # qv scalars
                pl.BlockSpec((None, None, th + 2, W2C),
                             lambda n, g: (n, g, 0, 0)),              # halo'd rows
                pl.BlockSpec((KH, W2C, C_lanes),
                             lambda n, g: (0, 0, 0)),                 # resident W
                pl.BlockSpec((1, C_lanes), lambda n, g: (0, 0)),      # resident b
            ],
            out_specs=pl.BlockSpec((None, th, C_lanes), lambda n, g: (n, g, 0)),
        ),
        compiler_params=pltpu.CompilerParams(
            dimension_semantics=("parallel", "parallel")),
    )(qv, groups, w_band, b_vec)

    # --- glue: back to NCHW (kept for PyTorch-semantics parity).  If the
    # consumer can take NHWC this transpose should be dropped. --------------
    y = out[:, :, :MC].reshape(N, H, W, Cout)
    return jnp.transpose(y, (0, 3, 1, 2))


# -----------------------------------------------------------------------------
# Quantization-encoding "calibration" (glue, plain JAX reductions).
# -----------------------------------------------------------------------------
def compute_encodings(x_nchw, weight, bias):
    # Input activation encoding (asymmetric uint8).
    x_min = jnp.minimum(jnp.min(x_nchw), 0.0)
    x_max = jnp.maximum(jnp.max(x_nchw), 0.0)
    in_s = jnp.maximum((x_max - x_min) / 255.0, 1e-8)
    in_zp = jnp.clip(jnp.round(-x_min / in_s), 0.0, 255.0)

    # Weight encoding (symmetric int8).
    w_s = jnp.maximum(jnp.max(jnp.abs(weight)) / 127.0, 1e-8)

    # Output activation encoding from a float calibration pass.
    y = lax.conv_general_dilated(
        x_nchw, weight, window_strides=(1, 1), padding="SAME",
        dimension_numbers=("NCHW", "OIHW", "NCHW"),
    ) + bias.reshape(1, -1, 1, 1)
    y_min = jnp.minimum(jnp.min(y), 0.0)
    y_max = jnp.maximum(jnp.max(y), 0.0)
    out_s = jnp.maximum((y_max - y_min) / 255.0, 1e-8)
    out_zp = jnp.clip(jnp.round(-y_min / out_s), 0.0, 255.0)
    return (in_s, in_zp, w_s, out_s, out_zp)


# -----------------------------------------------------------------------------
# Pure-JAX reference of the true fake-quant semantics:
#   quantize -> dequantize -> float conv (zero pad) -> +bias -> fake-quant out.
# Uses the same rounding expressions (x * 1/s) as the kernel path so the only
# deviations are float accumulation order (<= 1 output LSB at round-half ties).
# -----------------------------------------------------------------------------
def reference_forward(x_nchw, weight, bias, encodings):
    in_s, in_zp, w_s, out_s, out_zp = encodings
    q_x = jnp.clip(jnp.round(x_nchw * (1.0 / in_s)) + in_zp, 0.0, 255.0)
    deq_x = (q_x - in_zp) * in_s
    q_w = jnp.clip(jnp.round(weight / w_s), -128.0, 127.0)
    deq_w = q_w * w_s
    y = lax.conv_general_dilated(
        deq_x, deq_w, window_strides=(1, 1), padding="SAME",
        dimension_numbers=("NCHW", "OIHW", "NCHW"),
    ) + bias.reshape(1, -1, 1, 1)
    q_y = jnp.clip(jnp.round(y * (1.0 / out_s)) + out_zp, 0.0, 255.0)
    return (q_y - out_zp) * out_s


if __name__ == "__main__":
    key = jax.random.PRNGKey(0)
    k_x, k_w, k_b = jax.random.split(key, 3)

    N, Cin, H, W = 2, 4, 16, 16
    Cout, KH, KW = 8, 3, 3

    x = jax.random.normal(k_x, (N, Cin, H, W), dtype=jnp.float32)
    weight = jax.random.normal(k_w, (Cout, Cin, KH, KW), dtype=jnp.float32) * 0.1
    bias = jax.random.normal(k_b, (Cout,), dtype=jnp.float32) * 0.05

    encodings = compute_encodings(x, weight, bias)

    fwd = jax.jit(functools.partial(sim_wrapper_forward, rows_per_step=8))
    y = jax.block_until_ready(fwd(x, weight, bias, encodings))
    y_ref = jax.block_until_ready(reference_forward(x, weight, bias, encodings))

    y_np = np.asarray(y)
    y_ref_np = np.asarray(y_ref)
    lsb = float(encodings[3])                 # one output quantization step
    err = np.abs(y_np - y_ref_np)
    # Bit-exact up to round-half ties at quantization boundaries (float
    # accumulation-order differences): at most one output LSB, and essentially
    # everywhere exact.
    assert err.max() <= lsb * 1.001 + 1e-6, float(err.max())
    assert (err > 0.5 * lsb).mean() <= 0.01, float((err > 0.5 * lsb).mean())

    print("KERNEL_OK")
</pallas_src>

<mosaic_0001>
module attributes {stable_mosaic.version = 11 : i64} {
  func.func @fused_conv_kernel(%arg0: i32, %arg1: i32, %arg2: memref<4xf32, #tpu.memory_space<smem>>, %arg3: memref<1x1x10x72xf32, #tpu.memory_space<vmem>>, %arg4: memref<3x72x128xbf16, #tpu.memory_space<vmem>>, %arg5: memref<1x128xf32, #tpu.memory_space<vmem>>, %arg6: memref<1x8x128xf32, #tpu.memory_space<vmem>>) attributes {dimension_semantics = [#tpu.dimension_semantics<parallel>, #tpu.dimension_semantics<parallel>], iteration_bounds = array<i64: 2, 2>, scalar_prefetch = 0 : i64, scratch_operands = 0 : i64, tpu.core_type = #tpu.core_type<tc>, window_params = [{transform_indices = @transform_0, window_bounds = array<i64: 4>}, {transform_indices = @transform_1, window_bounds = array<i64: 1, 1, 10, 72>}, {pipeline_mode = #tpu.pipeline_mode<synchronous>, transform_indices = @transform_2, window_bounds = array<i64: 3, 72, 128>}, {pipeline_mode = #tpu.pipeline_mode<synchronous>, transform_indices = @transform_3, window_bounds = array<i64: 1, 128>}, {transform_indices = @transform_4, window_bounds = array<i64: 1, 8, 128>}]} {
    %c0 = arith.constant 0 : index
    %0 = memref.load %arg2[%c0] : memref<4xf32, #tpu.memory_space<smem>>
    %c1 = arith.constant 1 : index
    %1 = memref.load %arg2[%c1] : memref<4xf32, #tpu.memory_space<smem>>
    %c2 = arith.constant 2 : index
    %2 = memref.load %arg2[%c2] : memref<4xf32, #tpu.memory_space<smem>>
    %c3 = arith.constant 3 : index
    %3 = memref.load %arg2[%c3] : memref<4xf32, #tpu.memory_space<smem>>
    %cst = arith.constant 0.000000e+00 : f32
    %4 = vector.broadcast %cst : f32 to vector<8x128xf32>
    %c0_0 = arith.constant 0 : index
    %c0_1 = arith.constant 0 : index
    %c0_2 = arith.constant 0 : index
    %c0_3 = arith.constant 0 : index
    %5 = vector.load %arg3[%c0_0, %c0_1, %c0_2, %c0_3] : memref<1x1x10x72xf32, #tpu.memory_space<vmem>>, vector<1x1x8x72xf32>
    %6 = vector.shape_cast %5 : vector<1x1x8x72xf32> to vector<8x72xf32>
    %7 = arith.truncf %6 : vector<8x72xf32> to vector<8x72xbf16>
    %c0_4 = arith.constant 0 : index
    %c0_5 = arith.constant 0 : index
    %c0_6 = arith.constant 0 : index
    %8 = vector.load %arg4[%c0_4, %c0_5, %c0_6] : memref<3x72x128xbf16, #tpu.memory_space<vmem>>, vector<1x72x128xbf16>
    %9 = vector.shape_cast %8 : vector<1x72x128xbf16> to vector<72x128xbf16>
    %cst_7 = arith.constant dense<0.000000e+00> : vector<8x128xf32>
    %10 = tpu.matmul %7, %9, %cst_7 {dimension_numbers = #tpu.dot_dimension_numbers<[1], [0], [0], [1], [0, 0, 1, 1], [], []>} : vector<8x72xbf16>, vector<72x128xbf16>, vector<8x128xf32> -> vector<8x128xf32>
    %11 = arith.addf %4, %10 : vector<8x128xf32>
    %c0_8 = arith.constant 0 : index
    %c0_9 = arith.constant 0 : index
    %c1_10 = arith.constant 1 : index
    %c0_11 = arith.constant 0 : index
    %12 = vector.load %arg3[%c0_8, %c0_9, %c1_10, %c0_11] : memref<1x1x10x72xf32, #tpu.memory_space<vmem>>, vector<1x1x8x72xf32>
    %13 = vector.shape_cast %12 : vector<1x1x8x72xf32> to vector<8x72xf32>
    %14 = arith.truncf %13 : vector<8x72xf32> to vector<8x72xbf16>
    %c1_12 = arith.constant 1 : index
    %c0_13 = arith.constant 0 : index
    %c0_14 = arith.constant 0 : index
    %15 = vector.load %arg4[%c1_12, %c0_13, %c0_14] : memref<3x72x128xbf16, #tpu.memory_space<vmem>>, vector<1x72x128xbf16>
    %16 = vector.shape_cast %15 : vector<1x72x128xbf16> to vector<72x128xbf16>
    %cst_15 = arith.constant dense<0.000000e+00> : vector<8x128xf32>
    %17 = tpu.matmul %14, %16, %cst_15 {dimension_numbers = #tpu.dot_dimension_numbers<[1], [0], [0], [1], [0, 0, 1, 1], [], []>} : vector<8x72xbf16>, vector<72x128xbf16>, vector<8x128xf32> -> vector<8x128xf32>
    %18 = arith.addf %11, %17 : vector<8x128xf32>
    %c0_16 = arith.constant 0 : index
    %c0_17 = arith.constant 0 : index
    %c2_18 = arith.constant 2 : index
    %c0_19 = arith.constant 0 : index
    %19 = vector.load %arg3[%c0_16, %c0_17, %c2_18, %c0_19] : memref<1x1x10x72xf32, #tpu.memory_space<vmem>>, vector<1x1x8x72xf32>
    %20 = vector.shape_cast %19 : vector<1x1x8x72xf32> to vector<8x72xf32>
    %21 = arith.truncf %20 : vector<8x72xf32> to vector<8x72xbf16>
    %c2_20 = arith.constant 2 : index
    %c0_21 = arith.constant 0 : index
    %c0_22 = arith.constant 0 : index
    %22 = vector.load %arg4[%c2_20, %c0_21, %c0_22] : memref<3x72x128xbf16, #tpu.memory_space<vmem>>, vector<1x72x128xbf16>
    %23 = vector.shape_cast %22 : vector<1x72x128xbf16> to vector<72x128xbf16>
    %cst_23 = arith.constant dense<0.000000e+00> : vector<8x128xf32>
    %24 = tpu.matmul %21, %23, %cst_23 {dimension_numbers = #tpu.dot_dimension_numbers<[1], [0], [0], [1], [0, 0, 1, 1], [], []>} : vector<8x72xbf16>, vector<72x128xbf16>, vector<8x128xf32> -> vector<8x128xf32>
    %25 = arith.addf %18, %24 : vector<8x128xf32>
    %26 = vector.broadcast %0 : f32 to vector<8x128xf32>
    %27 = arith.mulf %25, %26 : vector<8x128xf32>
    %c0_24 = arith.constant 0 : index
    %c0_25 = arith.constant 0 : index
    %28 = vector.load %arg5[%c0_24, %c0_25] : memref<1x128xf32, #tpu.memory_space<vmem>>, vector<1x128xf32>
    %29 = vector.broadcast %28 : vector<1x128xf32> to vector<8x128xf32>
    %30 = arith.addf %27, %29 : vector<8x128xf32>
    %31 = math.roundeven %30 : vector<8x128xf32>
    %32 = vector.broadcast %1 : f32 to vector<8x128xf32>
    %33 = arith.maximumf %32, %31 : vector<8x128xf32>
    %34 = vector.broadcast %2 : f32 to vector<8x128xf32>
    %35 = arith.minimumf %34, %33 : vector<8x128xf32>
    %36 = vector.broadcast %3 : f32 to vector<8x128xf32>
    %37 = arith.mulf %35, %36 : vector<8x128xf32>
    %c0_26 = arith.constant 0 : index
    %c0_27 = arith.constant 0 : index
    %c0_28 = arith.constant 0 : index
    %38 = vector.load %arg6[%c0_26, %c0_27, %c0_28] : memref<1x8x128xf32, #tpu.memory_space<vmem>>, vector<1x8x128xf32>
    %39 = vector.shape_cast %38 : vector<1x8x128xf32> to vector<8x128xf32>
    %40 = vector.shape_cast %37 : vector<8x128xf32> to vector<1x8x128xf32>
    tpu.vector_store %arg6[%c0_26, %c0_27, %c0_28], %40 {strides = array<i32>} : memref<1x8x128xf32, #tpu.memory_space<vmem>>, vector<1x8x128xf32>,
    return
  }
  func.func @transform_0(%arg0: i32, %arg1: i32) -> i32 {
    %c0_i32 = arith.constant 0 : i32
    %c0_i32_0 = arith.constant 0 : i32
    return %c0_i32 : i32
  }
  func.func @transform_1(%arg0: i32, %arg1: i32) -> (i32, i32, i32, i32) {
    %c0_i32 = arith.constant 0 : i32
    %c0_i32_0 = arith.constant 0 : i32
    %c0_i32_1 = arith.constant 0 : i32
    return %arg0, %arg1, %c0_i32, %c0_i32_0 : i32, i32, i32, i32
  }
  func.func @transform_2(%arg0: i32, %arg1: i32) -> (i32, i32, i32) {
    %c0_i32 = arith.constant 0 : i32
    %c0_i32_0 = arith.constant 0 : i32
    %c0_i32_1 = arith.constant 0 : i32
    %c0_i32_2 = arith.constant 0 : i32
    return %c0_i32, %c0_i32_0, %c0_i32_1 : i32, i32, i32
  }
  func.func @transform_3(%arg0: i32, %arg1: i32) -> (i32, i32) {
    %c0_i32 = arith.constant 0 : i32
    %c0_i32_0 = arith.constant 0 : i32
    %c0_i32_1 = arith.constant 0 : i32
    return %c0_i32, %c0_i32_0 : i32, i32
  }
  func.func @transform_4(%arg0: i32, %arg1: i32) -> (i32, i32, i32) {
    %c0_i32 = arith.constant 0 : i32
    %c0_i32_0 = arith.constant 0 : i32
    return %arg0, %arg1, %c0_i32 : i32, i32, i32
  }
}

</mosaic_0001>

<llo_original>
// kernel: tile.8
$region0: #{tile.8}
  #allocation0 [shape = 's32[1]{0}', space=sflag, size = 0x4, scoped, tag = 'scoped memory for tile.8']
  %s0 = inlined_call_operand.vmem [shape: f32[8], index: 0, kind: input, shape index: {}]
  %s1 = inlined_call_operand.vmem [shape: f32[16,8], index: 1, kind: output, shape index: {}]
  // Predicated region
  $region2: #{tile.8} parent=0 // pred_check
    _
  $region3: #{tile.8} parent=0 // pred_check_branch
    %3 = sbr.rel (0) target = $region5
  $region4: #{tile.8} parent=0 // pred_region
    _
  $region5: #{tile.8} parent=0 // pred_fallthru
    _
  %v4 = vld [vmem:[%s0] ss:$0 sm:$0xff]
  %5 = vst [vmem:[%s1] sm:$0xff] %v4
  %s6 = scalar_lea.vmem %s1, 8
  %7 = vst [vmem:[%s6] sm:$0xff] %v4

// kernel: sim_wrapper_forward.1
$region0: #{sim_wrapper_forward.1}
  #allocation0 [shape = 'u32[]', space=smem, size = 0x4, offset = 0x4, fixed_abs, tag = 'smem constant byte address 0x4 - core index']
  #allocation1 [shape = 'u32[144,128]{1,0:T(1,128)}', space=vmem, size = 0x12000, scoped, tag = 'internal scratch']
  %s0 = inlined_call_operand.vmem [shape: f32[4], index: 0, kind: input, shape index: {}]
  %s1 = inlined_call_operand.vmem [shape: f32[2,2,10,72], index: 1, kind: input, shape index: {}]
  %s2 = inlined_call_operand.vmem [shape: bf16[3,72,128], index: 2, kind: input, shape index: {}]
  %s3 = inlined_call_operand.vmem [shape: f32[1,128], index: 3, kind: input, shape index: {}]
  %s4 = inlined_call_operand.vmem [shape: f32[2,16,128], index: 4, kind: output, shape index: {}]
  %s5 = sld [smem:[#allocation0]]
  $region53: #{sim_wrapper_forward.1} parent=0
    _
  %s7 = ssub.s32 1, %s5
  %s8 = scalar_select 0, %s7, %s5
  $region1: #{sim_wrapper_forward.1} parent=0
    #allocation2 [shape = 'u8[512]{0}', space=smem, size = 0x200, scoped, tag = 'input window, operand 0, single buffered']
    #allocation3 [shape = 's32[2]{0}', space=sflag, size = 0x8, scoped, tag = 'scoped memory for sim_wrapper_forward.1']
    %9 = vsyncpa [#allocation3], 0
    loop: start=0, step=1, limit=6
    $region2: #{sim_wrapper_forward.1} parent=1 // loop_pre_header
      _
    $region3: #{sim_wrapper_forward.1} parent=1 // loop_header
      %s11 = sphi 0, %s15
      %p12 = scmp.ge.s32.totalorder %s11, 6
      %s18 = sphi 0, %s30
      %s19 = sphi 0, %s26
      %s20 = sphi 0, %s18
      %s21 = sphi 0, %s19
      %s22 = sphi 0, %s20
      %s23 = sphi 0, %s21
      %s31 = sphi 0, %s31
      %s33 = sphi 0, %s31
      %s34 = sphi 0, %s33
      %s48 = sphi 0, %s34
      %s56 = sphi 0, %s58
      %s59 = sphi 0, %s56
      %s60 = sphi 0, %s59
      %s76 = sphi 0, %s60
      %s80 = sphi 0, %s80
      %s82 = sphi 0, %s80
      %s83 = sphi 0, %s82
      %s97 = sphi 0, %s83
      %s101 = sphi 0, %s101
      %s103 = sphi 0, %s101
      %s104 = sphi 0, %s103
      %s118 = sphi 0, %s104
      %s126 = sphi 0, %s128
      %s129 = sphi 0, %s126
      %s130 = sphi 0, %s129
      %s146 = sphi 0, %s130
    $region4: #{sim_wrapper_forward.1} parent=1 // loop_header_branch
      %14 = sbr.rel (%p12) target = $region8
    $region5: #{sim_wrapper_forward.1} parent=1 // loop_body
      %s16 = ssub.s32 %s11, 1
      %s17 = ssub.s32 %s11, 2
      %s24 = sadd.s32 1, %s19
      %p25 = scmp.ge.s32.totalorder %s24, 2
      %s26 = scalar_select %p25, 0, %s24
      %s27 = sadd.s32 1, %s18
      %s28 = scalar_select %p25, %s27, %s18
      %p29 = scmp.ge.s32.totalorder %s28, 2
      %s30 = scalar_select %p29, 0, %s28
      %s32 = sadd.s32 %s31, 1
      %p35 = scmp.eq.s32.totalorder %s11, 3
      %p36 = scmp.ne.s32.totalorder %s31, %s33
      %p37 = scmp.eq.s32.totalorder %s11, 0
      %p38 = por %p36, %p37
      %p39 = scmp.ne.s32.totalorder %s31, %s33
      %p40 = scmp.eq.s32.totalorder %s16, 3
      %p41 = por %p39, %p40
      %p42 = scmp.ne.s32.totalorder %s33, %s34
      %p43 = scmp.eq.s32.totalorder %s16, 0
      %p44 = por %p42, %p43
      %p45 = scmp.ne.s32.totalorder %s33, %s34
      %p46 = scmp.eq.s32.totalorder %s17, 3
      %p47 = por %p45, %p46
      %p49 = scmp.ne.s32.totalorder %s34, %s48
      %p50 = scmp.eq.s32.totalorder %s17, 0
      %p51 = por %p49, %p50
      %s52 = ssub.s32 %s18, %s30
      %s53 = ssub.s32 %s19, %s26
      %s54 = sor.u32 %s52, %s53
      %p55 = scmp.eq.s32.totalorder %s54, 0
      %s57 = sadd.s32 %s56, 1
      %s58 = scalar_select %p55, %s56, %s57
      %p61 = pneg %p55
      %p62 = scmp.eq.s32.totalorder %s11, 3
      %p63 = por %p61, %p62
      %p64 = scmp.ne.s32.totalorder %s56, %s59
      %p65 = scmp.eq.s32.totalorder %s11, 0
      %p66 = por %p64, %p65
      %p67 = scmp.ne.s32.totalorder %s56, %s59
      %p68 = scmp.eq.s32.totalorder %s16, 3
      %p69 = por %p67, %p68
      %p70 = scmp.ne.s32.totalorder %s59, %s60
      %p71 = scmp.eq.s32.totalorder %s16, 0
      %p72 = por %p70, %p71
      %p73 = scmp.ne.s32.totalorder %s59, %s60
      %p74 = scmp.eq.s32.totalorder %s17, 3
      %p75 = por %p73, %p74
      %p77 = scmp.ne.s32.totalorder %s60, %s76
      %p78 = scmp.eq.s32.totalorder %s17, 0
      %p79 = por %p77, %p78
      %s81 = sadd.s32 %s80, 1
      %p84 = scmp.eq.s32.totalorder %s11, 3
      %p85 = scmp.ne.s32.totalorder %s80, %s82
      %p86 = scmp.eq.s32.totalorder %s11, 0
      %p87 = por %p85, %p86
      %p88 = scmp.ne.s32.totalorder %s80, %s82
      %p89 = scmp.eq.s32.totalorder %s16, 3
      %p90 = por %p88, %p89
      %p91 = scmp.ne.s32.totalorder %s82, %s83
      %p92 = scmp.eq.s32.totalorder %s16, 0
      %p93 = por %p91, %p92
      %p94 = scmp.ne.s32.totalorder %s82, %s83
      %p95 = scmp.eq.s32.totalorder %s17, 3
      %p96 = por %p94, %p95
      %p98 = scmp.ne.s32.totalorder %s83, %s97
      %p99 = scmp.eq.s32.totalorder %s17, 0
      %p100 = por %p98, %p99
      %s102 = sadd.s32 %s101, 1
      %p105 = scmp.eq.s32.totalorder %s11, 3
      %p106 = scmp.ne.s32.totalorder %s101, %s103
      %p107 = scmp.eq.s32.totalorder %s11, 0
      %p108 = por %p106, %p107
      %p109 = scmp.ne.s32.totalorder %s101, %s103
      %p110 = scmp.eq.s32.totalorder %s16, 3
      %p111 = por %p109, %p110
      %p112 = scmp.ne.s32.totalorder %s103, %s104
      %p113 = scmp.eq.s32.totalorder %s16, 0
      %p114 = por %p112, %p113
      %p115 = scmp.ne.s32.totalorder %s103, %s104
      %p116 = scmp.eq.s32.totalorder %s17, 3
      %p117 = por %p115, %p116
      %p119 = scmp.ne.s32.totalorder %s104, %s118
      %p120 = scmp.eq.s32.totalorder %s17, 0
      %p121 = por %p119, %p120
      %s122 = ssub.s32 %s18, %s30
      %s123 = ssub.s32 %s19, %s26
      %s124 = sor.u32 %s122, %s123
      %p125 = scmp.eq.s32.totalorder %s124, 0
      %s127 = sadd.s32 %s126, 1
      %s128 = scalar_select %p125, %s126, %s127
      %p131 = pneg %p125
      %p132 = scmp.eq.s32.totalorder %s11, 3
      %p133 = por %p131, %p132
      %p134 = scmp.ne.s32.totalorder %s126, %s129
      %p135 = scmp.eq.s32.totalorder %s11, 0
      %p136 = por %p134, %p135
      %p137 = scmp.ne.s32.totalorder %s126, %s129
      %p138 = scmp.eq.s32.totalorder %s16, 3
      %p139 = por %p137, %p138
      %p140 = scmp.ne.s32.totalorder %s129, %s130
      %p141 = scmp.eq.s32.totalorder %s16, 0
      %p142 = por %p140, %p141
      %p143 = scmp.ne.s32.totalorder %s129, %s130
      %p144 = scmp.eq.s32.totalorder %s17, 3
      %p145 = por %p143, %p144
      %p147 = scmp.ne.s32.totalorder %s130, %s146
      %p148 = scmp.eq.s32.totalorder %s17, 0
      %p149 = por %p147, %p148
      %p150 = scmp.le.s32.totalorder 1, %s11
      %p151 = scmp.lt.s32.totalorder %s11, 5
      %p152 = pnand %p150, %p151
      %p153 = pneg %p152
      // Predicated region
      $region9: #{sim_wrapper_forward.1} parent=5 // pred_check
        _
      $region10: #{sim_wrapper_forward.1} parent=5 // pred_check_branch
        %155 = sbr.rel (%p152) target = $region12
      $region11: #{sim_wrapper_forward.1} parent=5 // pred_region
        %s156 = ssub.s32 %s11, 1
        // Predicated region
        $region13: #{sim_wrapper_forward.1} parent=11 // pred_check
          %p157 = pneg %p44
        $region14: #{sim_wrapper_forward.1} parent=11 // pred_check_branch
          %159 = sbr.rel (%p157) target = $region16
        $region15: #{sim_wrapper_forward.1} parent=11 // pred_region
          %s161 = ssub.s32 16, 16
          %162 = vsyncadd [#allocation3], %s161
          %s164 = sshll.u32 %s0, 4
          %s165 = int_to_ptr.vmem [resolvable:$true] %s164
          %167 = dma.vmem_to_smem %s165, 16, [#allocation2], [#allocation3]
        $region16: #{sim_wrapper_forward.1} parent=11 // pred_fallthru
          _
        // Predicated region
        $region17: #{sim_wrapper_forward.1} parent=11 // pred_check
          %p168 = pneg %p93
        $region18: #{sim_wrapper_forward.1} parent=11 // pred_check_branch
          %170 = sbr.rel (%p168) target = $region20
        $region19: #{sim_wrapper_forward.1} parent=11 // pred_region
          _
        $region20: #{sim_wrapper_forward.1} parent=11 // pred_fallthru
          _
        // Predicated region
        $region21: #{sim_wrapper_forward.1} parent=11 // pred_check
          %p171 = pneg %p114
        $region22: #{sim_wrapper_forward.1} parent=11 // pred_check_branch
          %173 = sbr.rel (%p171) target = $region24
        $region23: #{sim_wrapper_forward.1} parent=11 // pred_region
          _
        $region24: #{sim_wrapper_forward.1} parent=11 // pred_fallthru
          _
      $region12: #{sim_wrapper_forward.1} parent=5 // pred_fallthru
        _
      %p174 = scmp.lt.s32.totalorder %s11, 4
      // Predicated region
      $region25: #{sim_wrapper_forward.1} parent=5 // pred_check
        %p175 = pneg %p174
      $region26: #{sim_wrapper_forward.1} parent=5 // pred_check_branch
        %177 = sbr.rel (%p175) target = $region28
      $region27: #{sim_wrapper_forward.1} parent=5 // pred_region
        // Predicated region
        $region29: #{sim_wrapper_forward.1} parent=27 // pred_check
          %p178 = pneg %p66
        $region30: #{sim_wrapper_forward.1} parent=27 // pred_check_branch
          %180 = sbr.rel (%p178) target = $region32
        $region31: #{sim_wrapper_forward.1} parent=27 // pred_region
          %p181 = scmp.lt.s32.totalorder %s18, 1
          %s182 = scalar_select %p181, %s18, 1
          %p183 = scmp.lt.s32.totalorder %s19, 1
          %s184 = scalar_select %p183, %s19, 1
          %s185 = smul.addr %s184, 2
          %s186 = smul.addr %s182, 4
          %s187 = sadd.s32 %s185, %s186
          %s188 = smul.addr %s187, 8
          %s189 = scalar_lea.vmem %s1, %s188
        $region32: #{sim_wrapper_forward.1} parent=27 // pred_fallthru
          _
      $region28: #{sim_wrapper_forward.1} parent=5 // pred_fallthru
        _
      %p190 = scmp.le.s32.totalorder 1, %s11
      %p191 = scmp.lt.s32.totalorder %s11, 5
      %p192 = pnand %p190, %p191
      %p193 = pneg %p192
      // Predicated region
      $region33: #{sim_wrapper_forward.1} parent=5 // pred_check
        _
      $region34: #{sim_wrapper_forward.1} parent=5 // pred_check_branch
        %195 = sbr.rel (%p192) target = $region36
      $region35: #{sim_wrapper_forward.1} parent=5 // pred_region
        %s196 = ssub.s32 %s11, 1
        // Predicated region
        $region37: #{sim_wrapper_forward.1} parent=35 // pred_check
          %p197 = pneg %p44
        $region38: #{sim_wrapper_forward.1} parent=35 // pred_check_branch
          %199 = sbr.rel (%p197) target = $region40
        $region39: #{sim_wrapper_forward.1} parent=35 // pred_region
          %200 = dma.done [#allocation3], 16
        $region40: #{sim_wrapper_forward.1} parent=35 // pred_fallthru
          _
        %201 = sfence
        %p202 = pneg %p44
        %p203 = pneg %p41
        %p204 = scmp.lt.s32.totalorder %s20, 1
        %s205 = scalar_select %p204, %s20, 1
        %p206 = scmp.lt.s32.totalorder %s21, 1
        %s207 = scalar_select %p206, %s21, 1
        %s208 = smul.addr %s207, 2
        %s209 = smul.addr %s205, 4
        %s210 = sadd.s32 %s208, %s209
        %s211 = smul.addr %s210, 8
        %s212 = scalar_lea.vmem %s1, %s211
        %p213 = pneg %p72
        %p214 = pneg %p69
        %p215 = pneg %p93
        %p216 = pneg %p90
        %p217 = pneg %p114
        %p218 = pneg %p111
        %p219 = pneg %p142
        %p220 = pneg %p139
        %p221 = scmp.lt.s32.totalorder %s20, 1
        %s222 = scalar_select %p221, %s20, 1
        %p223 = scmp.lt.s32.totalorder %s21, 1
        %s224 = scalar_select %p223, %s21, 1
        %s225 = smul.addr %s222, 2
        %s226 = sadd.s32 %s224, %s225
        %s227 = smul.addr %s226, 8
        %s228 = scalar_lea.vmem %s4, %s227
        %p229 = scmp.lt.s32.totalorder %s20, 1
        %s230 = scalar_select %p229, %s20, 1
        %p231 = scmp.lt.s32.totalorder %s21, 1
        %s232 = scalar_select %p231, %s21, 1
        %s233 = smul.addr %s232, 2
        %s234 = smul.addr %s230, 4
        %s235 = sadd.s32 %s233, %s234
        %s236 = smul.addr %s235, 8
        %s237 = scalar_lea.vmem %s1, %s236
        %p238 = scmp.lt.s32.totalorder %s20, 1
        %s239 = scalar_select %p238, %s20, 1
        %p240 = scmp.lt.s32.totalorder %s21, 1
        %s241 = scalar_select %p240, %s21, 1
        %s242 = smul.addr %s239, 2
        %s243 = sadd.s32 %s241, %s242
        %s244 = smul.addr %s243, 8
        %s245 = scalar_lea.vmem %s4, %s244
        %s247 = sld [smem:[#allocation2]]
        %s248 = sld [smem:[#allocation2 + $0x1]]
        %s249 = sld [smem:[#allocation2 + $0x2]]
        %s250 = sld [smem:[#allocation2 + $0x3]]
        %v251 = vld [vmem:[%s237] sm:$0xff]
        %v252 = vpack.c.bf16 %v251, %v251
        %v253 = vld [vmem:[%s2] sm:$0xf]
        %v254 = vld [vmem:[%s2 + $0x4] sm:$0xf]
        %v255 = vld [vmem:[%s2 + $0x8] sm:$0xf]
        %v256 = vld [vmem:[%s2 + $0xc] sm:$0xf]
        %v257 = vld [vmem:[%s2 + $0x10] sm:$0xf]
        %v258 = vld [vmem:[%s2 + $0x14] sm:$0xf]
        %v259 = vld [vmem:[%s2 + $0x18] sm:$0xf]
        %v260 = vld [vmem:[%s2 + $0x1c] sm:$0xf]
        %v261 = vld [vmem:[%s2 + $0x20] sm:$0xf]
        %v262 = vld [vmem:[%s237 + $0x1] sm:$0xff]
        %v263 = vpack.c.bf16 %v262, %v262
        %s264 = scalar_lea.vmem %s2, 36
        %v265 = vld [vmem:[%s264] sm:$0xf]
        %v266 = vld [vmem:[%s264 + $0x4] sm:$0xf]
        %v267 = vld [vmem:[%s264 + $0x8] sm:$0xf]
        %v268 = vld [vmem:[%s264 + $0xc] sm:$0xf]
        %v269 = vld [vmem:[%s264 + $0x10] sm:$0xf]
        %v270 = vld [vmem:[%s264 + $0x14] sm:$0xf]
        %v271 = vld [vmem:[%s264 + $0x18] sm:$0xf]
        %v272 = vld [vmem:[%s264 + $0x1c] sm:$0xf]
        %v273 = vld [vmem:[%s264 + $0x20] sm:$0xf]
        %v283 = vunpack.c.l.b16 %v265
        %v284 = vunpack.c.l.b16 %v266
        %v285 = vunpack.c.l.b16 %v267
        %v286 = vunpack.c.l.b16 %v268
        %v287 = vunpack.c.l.b16 %v269
        %v288 = vunpack.c.l.b16 %v270
        %v289 = vunpack.c.l.b16 %v271
        %v290 = vunpack.c.l.b16 %v272
        %v291 = vunpack.c.l.b16 %v273
        %v292 = vpack.c.b16 %v284, %v283
        %v293 = vpack.c.b16 %v286, %v285
        %v294 = vpack.c.b16 %v288, %v287
        %v295 = vpack.c.b16 %v290, %v289
        %v296 = vpack.c.b16 %v291, %v291
        %vm301 = vcmask 588800
        %v303 = vsel %vm301, %v263, 0
        %vm305 = vcmask 1043456
        %v307 = vsel %vm305, %v296, 0
        %309 = vmatprep.subr.bf16.mxu0 0
        %310 = vmatpush1.bf16.msra.mxu0 %v292
        %311 = vmatprep.subr.bf16.mxu0 0
        %312 = vmatpush1.bf16.msra.mxu0 %v293
        %313 = vmatprep.subr.bf16.mxu0 0
        %314 = vmatpush1.bf16.msra.mxu0 %v294
        %315 = vmatprep.subr.bf16.mxu0 0
        %316 = vmatpush1.bf16.msra.mxu0 %v295
        %317 = vmatprep.subr.bf16.mxu0 0
        %318 = vmatpush1.bf16.msra.mxu0 %v307
        %319 = vmatprep.subr.bf16.mxu0 0
        %320 = vmatpush1.bf16.msra.mxu0 0
        %321 = vmatprep.subr.bf16.mxu0 0
        %322 = vmatpush1.bf16.msra.mxu0 0
        %323 = vmatprep.subr.bf16.mxu0 0
        %324 = vmatpush1.bf16.msra.mxu0 0
        %325 = vmatprep.subr.bf16.mxu0 0
        %326 = vmatpush1.bf16.msra.mxu0 0
        %327 = vmatprep.subr.bf16.mxu0 0
        %328 = vmatpush1.bf16.msra.mxu0 0
        %329 = vmatprep.subr.bf16.mxu0 0
        %330 = vmatpush1.bf16.msra.mxu0 0
        %331 = vmatprep.subr.bf16.mxu0 0
        %332 = vmatpush1.bf16.msra.mxu0 0
        %333 = vmatprep.subr.bf16.mxu0 0
        %334 = vmatpush1.bf16.msra.mxu0 0
        %335 = vmatprep.subr.bf16.mxu0 0
        %336 = vmatpush1.bf16.msra.mxu0 0
        %337 = vmatprep.subr.bf16.mxu0 0
        %338 = vmatpush1.bf16.msra.mxu0 0
        %339 = vmatprep.subr.bf16.mxu0 0
        %340 = vmatpush1.bf16.msra.mxu0 0
        %341 = vmatprep.mubr.bf16.mxu0 0
        %342 = vmatmul.mubr.bf16.gmra.mrb[0].mxu0 %v303
        %v343 = vpop.f32.mrb[0].mxu0
        %v344 = vadd.f32 0.0, %v343
        %v345 = vpop.f32.mrb[0].mxu0
        %v346 = vpop.f32.mrb[0].mxu0
        %v347 = vpop.f32.mrb[0].mxu0
        %348 = vdwg.mxu0
        %v358 = vunpack.c.l.b16 %v253
        %v359 = vunpack.c.l.b16 %v254
        %v360 = vunpack.c.l.b16 %v255
        %v361 = vunpack.c.l.b16 %v256
        %v362 = vunpack.c.l.b16 %v257
        %v363 = vunpack.c.l.b16 %v258
        %v364 = vunpack.c.l.b16 %v259
        %v365 = vunpack.c.l.b16 %v260
        %v366 = vunpack.c.l.b16 %v261
        %v367 = vpack.c.b16 %v359, %v358
        %v368 = vpack.c.b16 %v361, %v360
        %v369 = vpack.c.b16 %v363, %v362
        %v370 = vpack.c.b16 %v365, %v364
        %v371 = vpack.c.b16 %v366, %v366
        %v377 = vsel %vm301, %v252, 0
        %v380 = vsel %vm305, %v371, 0
        %382 = vmatprep.subr.bf16.mxu0 0
        %383 = vmatpush1.bf16.msra.mxu0 %v367
        %384 = vmatprep.subr.bf16.mxu0 0
        %385 = vmatpush1.bf16.msra.mxu0 %v368
        %386 = vmatprep.subr.bf16.mxu0 0
        %387 = vmatpush1.bf16.msra.mxu0 %v369
        %388 = vmatprep.subr.bf16.mxu0 0
        %389 = vmatpush1.bf16.msra.mxu0 %v370
        %390 = vmatprep.subr.bf16.mxu0 0
        %391 = vmatpush1.bf16.msra.mxu0 %v380
        %392 = vmatprep.subr.bf16.mxu0 0
        %393 = vmatpush1.bf16.msra.mxu0 0
        %394 = vmatprep.subr.bf16.mxu0 0
        %395 = vmatpush1.bf16.msra.mxu0 0
        %396 = vmatprep.subr.bf16.mxu0 0
        %397 = vmatpush1.bf16.msra.mxu0 0
        %398 = vmatprep.subr.bf16.mxu0 0
        %399 = vmatpush1.bf16.msra.mxu0 0
        %400 = vmatprep.subr.bf16.mxu0 0
        %401 = vmatpush1.bf16.msra.mxu0 0
        %402 = vmatprep.subr.bf16.mxu0 0
        %403 = vmatpush1.bf16.msra.mxu0 0
        %404 = vmatprep.subr.bf16.mxu0 0
        %405 = vmatpush1.bf16.msra.mxu0 0
        %406 = vmatprep.subr.bf16.mxu0 0
        %407 = vmatpush1.bf16.msra.mxu0 0
        %408 = vmatprep.subr.bf16.mxu0 0
        %409 = vmatpush1.bf16.msra.mxu0 0
        %410 = vmatprep.subr.bf16.mxu0 0
        %411 = vmatpush1.bf16.msra.mxu0 0
        %412 = vmatprep.subr.bf16.mxu0 0
        %413 = vmatpush1.bf16.msra.mxu0 0
        %414 = vmatprep.mubr.bf16.mxu0 0
        %415 = vmatmul.mubr.bf16.gmra.mrb[0].mxu0 %v377
        %v416 = vpop.f32.mrb[0].mxu0
        %v417 = vadd.f32 %v344, %v416
        %v418 = vpop.f32.mrb[0].mxu0
        %v419 = vpop.f32.mrb[0].mxu0
        %v420 = vpop.f32.mrb[0].mxu0
        %421 = vdwg.mxu0
        %v422 = vld [vmem:[%s237 + $0x2] sm:$0xff]
        %v423 = vpack.c.bf16 %v422, %v422
        %s424 = scalar_lea.vmem %s2, 72
        %v425 = vld [vmem:[%s424] sm:$0xf]
        %v426 = vld [vmem:[%s424 + $0x4] sm:$0xf]
        %v427 = vld [vmem:[%s424 + $0x8] sm:$0xf]
        %v428 = vld [vmem:[%s424 + $0xc] sm:$0xf]
        %v429 = vld [vmem:[%s424 + $0x10] sm:$0xf]
        %v430 = vld [vmem:[%s424 + $0x14] sm:$0xf]
        %v431 = vld [vmem:[%s424 + $0x18] sm:$0xf]
        %v432 = vld [vmem:[%s424 + $0x1c] sm:$0xf]
        %v433 = vld [vmem:[%s424 + $0x20] sm:$0xf]
        %v443 = vunpack.c.l.b16 %v425
        %v444 = vunpack.c.l.b16 %v426
        %v445 = vunpack.c.l.b16 %v427
        %v446 = vunpack.c.l.b16 %v428
        %v447 = vunpack.c.l.b16 %v429
        %v448 = vunpack.c.l.b16 %v430
        %v449 = vunpack.c.l.b16 %v431
        %v450 = vunpack.c.l.b16 %v432
        %v451 = vunpack.c.l.b16 %v433
        %v452 = vpack.c.b16 %v444, %v443
        %v453 = vpack.c.b16 %v446, %v445
        %v454 = vpack.c.b16 %v448, %v447
        %v455 = vpack.c.b16 %v450, %v449
        %v456 = vpack.c.b16 %v451, %v451
        %v462 = vsel %vm301, %v423, 0
        %v465 = vsel %vm305, %v456, 0
        %467 = vmatprep.subr.bf16.mxu0 0
        %468 = vmatpush1.bf16.msra.mxu0 %v452
        %469 = vmatprep.subr.bf16.mxu0 0
        %470 = vmatpush1.bf16.msra.mxu0 %v453
        %471 = vmatprep.subr.bf16.mxu0 0
        %472 = vmatpush1.bf16.msra.mxu0 %v454
        %473 = vmatprep.subr.bf16.mxu0 0
        %474 = vmatpush1.bf16.msra.mxu0 %v455
        %475 = vmatprep.subr.bf16.mxu0 0
        %476 = vmatpush1.bf16.msra.mxu0 %v465
        %477 = vmatprep.subr.bf16.mxu0 0
        %478 = vmatpush1.bf16.msra.mxu0 0
        %479 = vmatprep.subr.bf16.mxu0 0
        %480 = vmatpush1.bf16.msra.mxu0 0
        %481 = vmatprep.subr.bf16.mxu0 0
        %482 = vmatpush1.bf16.msra.mxu0 0
        %483 = vmatprep.subr.bf16.mxu0 0
        %484 = vmatpush1.bf16.msra.mxu0 0
        %485 = vmatprep.subr.bf16.mxu0 0
        %486 = vmatpush1.bf16.msra.mxu0 0
        %487 = vmatprep.subr.bf16.mxu0 0
        %488 = vmatpush1.bf16.msra.mxu0 0
        %489 = vmatprep.subr.bf16.mxu0 0
        %490 = vmatpush1.bf16.msra.mxu0 0
        %491 = vmatprep.subr.bf16.mxu0 0
        %492 = vmatpush1.bf16.msra.mxu0 0
        %493 = vmatprep.subr.bf16.mxu0 0
        %494 = vmatpush1.bf16.msra.mxu0 0
        %495 = vmatprep.subr.bf16.mxu0 0
        %496 = vmatpush1.bf16.msra.mxu0 0
        %497 = vmatprep.subr.bf16.mxu0 0
        %498 = vmatpush1.bf16.msra.mxu0 0
        %499 = vmatprep.mubr.bf16.mxu0 0
        %500 = vmatmul.mubr.bf16.gmra.mrb[0].mxu0 %v462
        %v501 = vpop.f32.mrb[0].mxu0
        %v502 = vadd.f32 0.0, %v501
        %v503 = vpop.f32.mrb[0].mxu0
        %v504 = vpop.f32.mrb[0].mxu0
        %v505 = vpop.f32.mrb[0].mxu0
        %506 = vdwg.mxu0
        %v507 = vadd.f32 %v417, %v502
        %v508 = vstv %s247
        %v509 = vmul.f32 %v507, %v508
        %v510 = vld [vmem:[%s3] sm:$0x1]
        %v512 = vlaneseq
        %v513 = vshrl.u32 %v512, 7
        %v514 = vsub.s32 0, %v513
        %v515 = vrot.slane %v510, %v514
        %v517 = vadd.f32 %v509, %v515
        %v518 = vround.ne.pseudo %v517
        %v519 = vstv %s248
        %v520 = vmax.f32 %v519, %v518
        %v521 = vstv %s249
        %v522 = vmin.f32 %v521, %v520
        %v523 = vstv %s250
        %v524 = vmul.f32 %v522, %v523
        %525 = vst [vmem:[%s245] sm:$0xff] %v524
        %p526 = scmp.lt.s32.totalorder %s20, 1
        %s527 = scalar_select %p526, %s20, 1
        %p528 = scmp.lt.s32.totalorder %s21, 1
        %s529 = scalar_select %p528, %s21, 1
        %s530 = smul.addr %s527, 2
        %s531 = sadd.s32 %s529, %s530
        %s532 = smul.addr %s531, 8
        %s533 = scalar_lea.vmem %s4, %s532
        // Predicated region
        $region41: #{sim_wrapper_forward.1} parent=35 // pred_check
          %p534 = pneg %p139
        $region42: #{sim_wrapper_forward.1} parent=35 // pred_check_branch
          %536 = sbr.rel (%p534) target = $region44
        $region43: #{sim_wrapper_forward.1} parent=35 // pred_region
          _
        $region44: #{sim_wrapper_forward.1} parent=35 // pred_fallthru
          _
      $region36: #{sim_wrapper_forward.1} parent=5 // pred_fallthru
        _
      %p537 = scmp.le.s32.totalorder 2, %s11
      // Predicated region
      $region45: #{sim_wrapper_forward.1} parent=5 // pred_check
        %p538 = pneg %p537
      $region46: #{sim_wrapper_forward.1} parent=5 // pred_check_branch
        %540 = sbr.rel (%p538) target = $region48
      $region47: #{sim_wrapper_forward.1} parent=5 // pred_region
        %s541 = ssub.s32 %s11, 2
        // Predicated region
        $region49: #{sim_wrapper_forward.1} parent=47 // pred_check
          %p542 = pneg %p145
        $region50: #{sim_wrapper_forward.1} parent=47 // pred_check_branch
          %544 = sbr.rel (%p542) target = $region52
        $region51: #{sim_wrapper_forward.1} parent=47 // pred_region
          %p545 = scmp.lt.s32.totalorder %s22, 1
          %s546 = scalar_select %p545, %s22, 1
          %p547 = scmp.lt.s32.totalorder %s23, 1
          %s548 = scalar_select %p547, %s23, 1
          %s549 = smul.addr %s546, 2
          %s550 = sadd.s32 %s548, %s549
          %s551 = smul.addr %s550, 8
          %s552 = scalar_lea.vmem %s4, %s551
        $region52: #{sim_wrapper_forward.1} parent=47 // pred_fallthru
          _
      $region48: #{sim_wrapper_forward.1} parent=5 // pred_fallthru
        _
    $region6: #{sim_wrapper_forward.1} parent=1 // loop_footer
      %s15 = sadd.s32 1, %s11
    $region7: #{sim_wrapper_forward.1} parent=1 // loop_footer_branch
      %10 = sbr.rel target = $region3
    $region8: #{sim_wrapper_forward.1} parent=1 // loop_exit
      _
    %553 = vsyncpa [#allocation3], 1
    %s554 = scalar_lea.sflag [#allocation3], 1
    %555 = vsyncpa %s554, 1

</llo_original>
